<compile_context>
chip_gen: v5e
topology: v5e:2x2
jax: 0.10.0
libtpu: 0.0.40
codegen_flags: <defaults>
</compile_context>

<pallas_src>
import numpy as np

import jax
import jax.numpy as jnp
from jax.experimental import pallas as pl
from jax.experimental.pallas import tpu as pltpu


LOG_2PI_HALF = 0.5 * float(np.log(2.0 * np.pi))

# Fused (block-diagonal) hidden widths — lane-friendly.
H1 = 128            # [ actor 0:48 | critic 48:96 | pad ]
H2 = 384            # [ actor 0:180 | critic 180:360 | pad ]
H3 = 128            # [ actor 0:38 | critic 38:76 | pad ]
OUT_W = 128         # packed output slab width

# Output-slab column layout (requires action_space <= 32).
MEAN_COL = 0        # cols [0, A)
ACTION_COL = 32     # cols [32, 32 + A)
V_COL = 64          # col 64
LOGPROB_COL = 65    # col 65


def _round_up(x, m):
    return ((x + m - 1) // m) * m


def _mlp_kernel(
    x_ref, noise_ref,
    w1_ref, b1_ref, w2_ref, b2_ref, w3_ref, b3_ref, wh_ref, bh_ref,
    place_ref, lpmask_ref,
    out_ref,
):
    bf16 = jnp.bfloat16
    f32 = jnp.float32

    # Fused actor|critic trunk (block-diagonal bf16 weights; padding columns
    # stay exactly zero through the ReLUs because their weights/biases are 0).
    x = x_ref[...].astype(bf16)
    h = jnp.maximum(
        jnp.dot(x, w1_ref[...], preferred_element_type=f32) + b1_ref[...], 0.0)
    h = jnp.maximum(
        jnp.dot(h.astype(bf16), w2_ref[...], preferred_element_type=f32) + b2_ref[...], 0.0)
    h = jnp.maximum(
        jnp.dot(h.astype(bf16), w3_ref[...], preferred_element_type=f32) + b3_ref[...], 0.0)

    # Fused head: slab holds mean (cols 0:A), mean again at the action cols
    # (32:32+A), critic value at col 64 and the logprob constant at col 65.
    slab = jnp.dot(h.astype(bf16), wh_ref[...], preferred_element_type=f32) + bh_ref[...]

    # action = mean + std * noise.  The (A, OUT_W) placement matrix has
    # exp(logstd) folded in and only touches cols [32, 32+A) -> one tiny
    # 1-tile matmul instead of a 128-wide noise slab.
    noise = noise_ref[...]                                   # (TB, A) f32
    slab = slab + jnp.dot(noise.astype(bf16), place_ref[...],
                          preferred_element_type=f32)

    # logprob = -0.5 * sum(noise^2) + const (const already in the head bias).
    # Kept in f32 for accuracy; placed via a hoisted one-hot (1, OUT_W) mask.
    lp = -0.5 * jnp.sum(noise * noise, axis=-1, keepdims=True)   # (TB, 1)
    slab = slab + lp * lpmask_ref[...]

    out_ref[...] = slab


def fuse_params(params, obs_space, action_space):
    """Build block-diagonal fused weights + packed head (done once, in XLA)."""
    A = action_space
    f32 = jnp.float32
    bf16 = jnp.bfloat16

    w1 = jnp.zeros((obs_space, H1), f32)
    w1 = w1.at[:, 0:48].set(params["w_act1"]).at[:, 48:96].set(params["w_val1"])
    b1 = jnp.zeros((1, H1), f32)
    b1 = b1.at[:, 0:48].set(params["b_act1"]).at[:, 48:96].set(params["b_val1"])

    w2 = jnp.zeros((H1, H2), f32)
    w2 = w2.at[0:48, 0:180].set(params["w_act2"]).at[48:96, 180:360].set(params["w_val2"])
    b2 = jnp.zeros((1, H2), f32)
    b2 = b2.at[:, 0:180].set(params["b_act2"]).at[:, 180:360].set(params["b_val2"])

    w3 = jnp.zeros((H2, H3), f32)
    w3 = w3.at[0:180, 0:38].set(params["w_act3"]).at[180:360, 38:76].set(params["w_val3"])
    b3 = jnp.zeros((1, H3), f32)
    b3 = b3.at[:, 0:38].set(params["b_act3"]).at[:, 38:76].set(params["b_val3"])

    logstd = params["logstd"]                      # (1, A)
    std = jnp.exp(logstd)
    lp_const = -(A * LOG_2PI_HALF) - jnp.sum(logstd)

    wh = jnp.zeros((H3, OUT_W), f32)
    wh = wh.at[0:38, MEAN_COL:MEAN_COL + A].set(params["w_mu"])
    wh = wh.at[0:38, ACTION_COL:ACTION_COL + A].set(params["w_mu"])   # action base = mean
    wh = wh.at[38:76, V_COL:V_COL + 1].set(params["w_val4"])
    bh = jnp.zeros((1, OUT_W), f32)
    bh = bh.at[:, MEAN_COL:MEAN_COL + A].set(params["b_mu"])
    bh = bh.at[:, ACTION_COL:ACTION_COL + A].set(params["b_mu"])
    bh = bh.at[:, V_COL:V_COL + 1].set(params["b_val4"])
    bh = bh.at[:, LOGPROB_COL].set(lp_const)

    # (A, OUT_W) placement matrix: noise @ place lands std*noise in the
    # action columns.  std is folded in here (exp hoisted out of the kernel).
    place = jnp.zeros((A, OUT_W), f32)
    place = place.at[jnp.arange(A), ACTION_COL + jnp.arange(A)].set(std[0])

    # One-hot f32 mask selecting the logprob column (hoisted out of kernel).
    lpmask = jnp.zeros((1, OUT_W), f32).at[:, LOGPROB_COL].set(1.0)

    return dict(
        # bf16 matmul operands (f32 accumulation in-kernel).
        w1=w1.astype(bf16), w2=w2.astype(bf16), w3=w3.astype(bf16),
        wh=wh.astype(bf16), place=place.astype(bf16),
        # biases / masks stay f32.
        b1=b1, b2=b2, b3=b3, bh=bh, lpmask=lpmask,
    )


def mlp_forward(x, noise, params, *, block_b=1024, vmem_limit_bytes=None):
    """x: [B, obs_space] f32, noise: [B, action_space] f32 ~ N(0,1).

    Returns (v [B,1], action [B,A], logprob [B,1], mean [B,A]).
    """
    B, obs = x.shape
    A = params["w_mu"].shape[1]
    assert A <= 32, "packed output slab layout requires action_space <= 32"

    fused = fuse_params(params, obs, A)

    # Pad-aware batch tiling:
    #  * at least 2 grid steps whenever B allows it (feeds both v7x TCs;
    #    grid is just a sequential loop on v5e/v6e, so this is free there),
    #  * TB = round_up(ceil(B / n_tiles), 8) keeps batch padding < 8 rows
    #    per tile-count choice (no near-2x pad blowup just above a boundary).
    n_tiles = max(2, pl.cdiv(B, block_b))
    TB = _round_up(pl.cdiv(B, n_tiles), 8)
    TB = min(TB, _round_up(B, 8))
    Bp = _round_up(B, TB)

    x_p = jnp.pad(x, ((0, Bp - B), (0, 0)))
    noise_p = jnp.pad(noise, ((0, Bp - B), (0, 0)))

    batch_spec = lambda w: pl.BlockSpec((TB, w), lambda i: (i, 0))
    resident = lambda shape: pl.BlockSpec(shape, lambda i: (0, 0))

    slab = pl.pallas_call(
        _mlp_kernel,
        out_shape=jax.ShapeDtypeStruct((Bp, OUT_W), jnp.float32),
        grid=(Bp // TB,),
        in_specs=[
            batch_spec(obs),            # x      (pipelined over batch)
            batch_spec(A),              # noise  (pipelined over batch, natural width)
            resident((obs, H1)), resident((1, H1)),
            resident((H1, H2)), resident((1, H2)),
            resident((H2, H3)), resident((1, H3)),
            resident((H3, OUT_W)), resident((1, OUT_W)),
            resident((A, OUT_W)),       # std-folded noise placement matrix
            resident((1, OUT_W)),       # logprob-column one-hot mask
        ],
        out_specs=batch_spec(OUT_W),
        compiler_params=pltpu.CompilerParams(
            dimension_semantics=("parallel",),    # megacore on v7x
            vmem_limit_bytes=vmem_limit_bytes),   # only needed for block_b >= 2048
    )(x_p, noise_p,
      fused["w1"], fused["b1"], fused["w2"], fused["b2"],
      fused["w3"], fused["b3"], fused["wh"], fused["bh"],
      fused["place"], fused["lpmask"])

    v = slab[:B, V_COL:V_COL + 1]
    action = slab[:B, ACTION_COL:ACTION_COL + A]
    logprob = slab[:B, LOGPROB_COL:LOGPROB_COL + 1]
    mean = slab[:B, MEAN_COL:MEAN_COL + A]
    return v, action, logprob, mean


def init_params(key, obs_space, action_space):
    """Mirror nn.Linear defaults (uniform(-k, k), k=1/sqrt(fan_in)); weights [in, out]."""
    def linear(k, fan_in, fan_out):
        kw, kb = jax.random.split(k)
        bound = 1.0 / float(np.sqrt(fan_in))
        w = jax.random.uniform(kw, (fan_in, fan_out), jnp.float32, -bound, bound)
        b = jax.random.uniform(kb, (1, fan_out), jnp.float32, -bound, bound)
        return w, b

    keys = jax.random.split(key, 8)
    w_act1, b_act1 = linear(keys[0], obs_space, 48)
    w_act2, b_act2 = linear(keys[1], 48, 180)
    w_act3, b_act3 = linear(keys[2], 180, 38)
    w_mu, b_mu = linear(keys[3], 38, action_space)
    w_mu = w_mu * 0.1                            # self.mu.weight.data.mul_(0.1)
    w_val1, b_val1 = linear(keys[4], obs_space, 48)
    w_val2, b_val2 = linear(keys[5], 48, 180)
    w_val3, b_val3 = linear(keys[6], 180, 38)
    w_val4, b_val4 = linear(keys[7], 38, 1)
    # NOTE: self.value_fc4.weight.data.mul(0.1) in the reference is NOT in-place
    # (no trailing underscore) -> no-op; intentionally not applied.
    logstd = jnp.zeros((1, action_space), jnp.float32)

    return dict(
        w_act1=w_act1, b_act1=b_act1, w_act2=w_act2, b_act2=b_act2,
        w_act3=w_act3, b_act3=b_act3, w_mu=w_mu, b_mu=b_mu, logstd=logstd,
        w_val1=w_val1, b_val1=b_val1, w_val2=w_val2, b_val2=b_val2,
        w_val3=w_val3, b_val3=b_val3, w_val4=w_val4, b_val4=b_val4,
    )


def reference_forward(x, noise, params):
    """Pure-JAX f32 reference (matches the PyTorch module's forward)."""
    relu = lambda t: jnp.maximum(t, 0.0)
    act = relu(x @ params["w_act1"] + params["b_act1"])
    act = relu(act @ params["w_act2"] + params["b_act2"])
    act = relu(act @ params["w_act3"] + params["b_act3"])
    mean = act @ params["w_mu"] + params["b_mu"]
    logstd = params["logstd"]
    std = jnp.exp(logstd)
    action = mean + std * noise
    v = relu(x @ params["w_val1"] + params["b_val1"])
    v = relu(v @ params["w_val2"] + params["b_val2"])
    v = relu(v @ params["w_val3"] + params["b_val3"])
    v = v @ params["w_val4"] + params["b_val4"]
    var = std * std
    logd = -(action - mean) ** 2 / (2 * var) - LOG_2PI_HALF - logstd
    logprob = jnp.sum(logd, axis=1, keepdims=True)
    return v, action, logprob, mean


if __name__ == "__main__":
    obs_space = 32
    action_space = 4
    batch = 2

    key = jax.random.PRNGKey(0)
    k_params, k_x, k_noise = jax.random.split(key, 3)

    params = init_params(k_params, obs_space, action_space)
    x = jax.random.normal(k_x, (batch, obs_space), jnp.float32)
    noise = jax.random.normal(k_noise, (batch, action_space), jnp.float32)

    v, action, logprob, mean = jax.block_until_ready(mlp_forward(x, noise, params))

    # bf16 MXU operands (f32 accumulation) -> compare against the f32
    # reference at bf16-appropriate tolerances.
    v_r, action_r, logprob_r, mean_r = reference_forward(x, noise, params)
    np.testing.assert_allclose(np.asarray(v), np.asarray(v_r), rtol=3e-2, atol=3e-2)
    np.testing.assert_allclose(np.asarray(action), np.asarray(action_r), rtol=3e-2, atol=3e-2)
    np.testing.assert_allclose(np.asarray(logprob), np.asarray(logprob_r), rtol=3e-2, atol=3e-2)
    np.testing.assert_allclose(np.asarray(mean), np.asarray(mean_r), rtol=3e-2, atol=3e-2)

    assert v.shape == (batch, 1)
    assert action.shape == (batch, action_space)
    assert logprob.shape == (batch, 1)
    assert mean.shape == (batch, action_space)

    print("KERNEL_OK")
</pallas_src>

<mosaic_0001>
module attributes {stable_mosaic.version = 11 : i64} {
  func.func @_mlp_kernel(%arg0: i32, %arg1: memref<8x32xf32, #tpu.memory_space<vmem>>, %arg2: memref<8x4xf32, #tpu.memory_space<vmem>>, %arg3: memref<32x128xbf16, #tpu.memory_space<vmem>>, %arg4: memref<1x128xf32, #tpu.memory_space<vmem>>, %arg5: memref<128x384xbf16, #tpu.memory_space<vmem>>, %arg6: memref<1x384xf32, #tpu.memory_space<vmem>>, %arg7: memref<384x128xbf16, #tpu.memory_space<vmem>>, %arg8: memref<1x128xf32, #tpu.memory_space<vmem>>, %arg9: memref<128x128xbf16, #tpu.memory_space<vmem>>, %arg10: memref<1x128xf32, #tpu.memory_space<vmem>>, %arg11: memref<4x128xbf16, #tpu.memory_space<vmem>>, %arg12: memref<1x128xf32, #tpu.memory_space<vmem>>, %arg13: memref<8x128xf32, #tpu.memory_space<vmem>>) attributes {dimension_semantics = [#tpu.dimension_semantics<parallel>], iteration_bounds = array<i64: 1>, scalar_prefetch = 0 : i64, scratch_operands = 0 : i64, tpu.core_type = #tpu.core_type<tc>, window_params = [{transform_indices = @transform_0, window_bounds = array<i64: 8, 32>}, {transform_indices = @transform_1, window_bounds = array<i64: 8, 4>}, {pipeline_mode = #tpu.pipeline_mode<synchronous>, transform_indices = @transform_2, window_bounds = array<i64: 32, 128>}, {pipeline_mode = #tpu.pipeline_mode<synchronous>, transform_indices = @transform_3, window_bounds = array<i64: 1, 128>}, {pipeline_mode = #tpu.pipeline_mode<synchronous>, transform_indices = @transform_4, window_bounds = array<i64: 128, 384>}, {pipeline_mode = #tpu.pipeline_mode<synchronous>, transform_indices = @transform_5, window_bounds = array<i64: 1, 384>}, {pipeline_mode = #tpu.pipeline_mode<synchronous>, transform_indices = @transform_6, window_bounds = array<i64: 384, 128>}, {pipeline_mode = #tpu.pipeline_mode<synchronous>, transform_indices = @transform_7, window_bounds = array<i64: 1, 128>}, {pipeline_mode = #tpu.pipeline_mode<synchronous>, transform_indices = @transform_8, window_bounds = array<i64: 128, 128>}, {pipeline_mode = #tpu.pipeline_mode<synchronous>, transform_indices = @transform_9, window_bounds = array<i64: 1, 128>}, {pipeline_mode = #tpu.pipeline_mode<synchronous>, transform_indices = @transform_10, window_bounds = array<i64: 4, 128>}, {pipeline_mode = #tpu.pipeline_mode<synchronous>, transform_indices = @transform_11, window_bounds = array<i64: 1, 128>}, {transform_indices = @transform_12, window_bounds = array<i64: 8, 128>}]} {
    %c0 = arith.constant 0 : index
    %c0_0 = arith.constant 0 : index
    %0 = vector.load %arg1[%c0, %c0_0] : memref<8x32xf32, #tpu.memory_space<vmem>>, vector<8x32xf32>
    %1 = arith.truncf %0 : vector<8x32xf32> to vector<8x32xbf16>
    %c0_1 = arith.constant 0 : index
    %c0_2 = arith.constant 0 : index
    %2 = vector.load %arg3[%c0_1, %c0_2] : memref<32x128xbf16, #tpu.memory_space<vmem>>, vector<32x128xbf16>
    %cst = arith.constant dense<0.000000e+00> : vector<8x128xf32>
    %3 = tpu.matmul %1, %2, %cst {dimension_numbers = #tpu.dot_dimension_numbers<[1], [0], [0], [1], [0, 0, 1, 1], [], []>} : vector<8x32xbf16>, vector<32x128xbf16>, vector<8x128xf32> -> vector<8x128xf32>
    %c0_3 = arith.constant 0 : index
    %c0_4 = arith.constant 0 : index
    %4 = vector.load %arg4[%c0_3, %c0_4] : memref<1x128xf32, #tpu.memory_space<vmem>>, vector<1x128xf32>
    %5 = vector.broadcast %4 : vector<1x128xf32> to vector<8x128xf32>
    %6 = arith.addf %3, %5 : vector<8x128xf32>
    %cst_5 = arith.constant 0.000000e+00 : f32
    %7 = vector.broadcast %cst_5 : f32 to vector<8x128xf32>
    %8 = arith.maximumf %6, %7 : vector<8x128xf32>
    %9 = arith.truncf %8 : vector<8x128xf32> to vector<8x128xbf16>
    %c0_6 = arith.constant 0 : index
    %c0_7 = arith.constant 0 : index
    %10 = vector.load %arg5[%c0_6, %c0_7] : memref<128x384xbf16, #tpu.memory_space<vmem>>, vector<128x384xbf16>
    %cst_8 = arith.constant dense<0.000000e+00> : vector<8x384xf32>
    %11 = tpu.matmul %9, %10, %cst_8 {dimension_numbers = #tpu.dot_dimension_numbers<[1], [0], [0], [1], [0, 0, 1, 1], [], []>} : vector<8x128xbf16>, vector<128x384xbf16>, vector<8x384xf32> -> vector<8x384xf32>
    %c0_9 = arith.constant 0 : index
    %c0_10 = arith.constant 0 : index
    %12 = vector.load %arg6[%c0_9, %c0_10] : memref<1x384xf32, #tpu.memory_space<vmem>>, vector<1x384xf32>
    %13 = vector.broadcast %12 : vector<1x384xf32> to vector<8x384xf32>
    %14 = arith.addf %11, %13 : vector<8x384xf32>
    %cst_11 = arith.constant 0.000000e+00 : f32
    %15 = vector.broadcast %cst_11 : f32 to vector<8x384xf32>
    %16 = arith.maximumf %14, %15 : vector<8x384xf32>
    %17 = arith.truncf %16 : vector<8x384xf32> to vector<8x384xbf16>
    %c0_12 = arith.constant 0 : index
    %c0_13 = arith.constant 0 : index
    %18 = vector.load %arg7[%c0_12, %c0_13] : memref<384x128xbf16, #tpu.memory_space<vmem>>, vector<384x128xbf16>
    %cst_14 = arith.constant dense<0.000000e+00> : vector<8x128xf32>
    %19 = tpu.matmul %17, %18, %cst_14 {dimension_numbers = #tpu.dot_dimension_numbers<[1], [0], [0], [1], [0, 0, 1, 1], [], []>} : vector<8x384xbf16>, vector<384x128xbf16>, vector<8x128xf32> -> vector<8x128xf32>
    %c0_15 = arith.constant 0 : index
    %c0_16 = arith.constant 0 : index
    %20 = vector.load %arg8[%c0_15, %c0_16] : memref<1x128xf32, #tpu.memory_space<vmem>>, vector<1x128xf32>
    %21 = vector.broadcast %20 : vector<1x128xf32> to vector<8x128xf32>
    %22 = arith.addf %19, %21 : vector<8x128xf32>
    %cst_17 = arith.constant 0.000000e+00 : f32
    %23 = vector.broadcast %cst_17 : f32 to vector<8x128xf32>
    %24 = arith.maximumf %22, %23 : vector<8x128xf32>
    %25 = arith.truncf %24 : vector<8x128xf32> to vector<8x128xbf16>
    %c0_18 = arith.constant 0 : index
    %c0_19 = arith.constant 0 : index
    %26 = vector.load %arg9[%c0_18, %c0_19] : memref<128x128xbf16, #tpu.memory_space<vmem>>, vector<128x128xbf16>
    %cst_20 = arith.constant dense<0.000000e+00> : vector<8x128xf32>
    %27 = tpu.matmul %25, %26, %cst_20 {dimension_numbers = #tpu.dot_dimension_numbers<[1], [0], [0], [1], [0, 0, 1, 1], [], []>} : vector<8x128xbf16>, vector<128x128xbf16>, vector<8x128xf32> -> vector<8x128xf32>
    %c0_21 = arith.constant 0 : index
    %c0_22 = arith.constant 0 : index
    %28 = vector.load %arg10[%c0_21, %c0_22] : memref<1x128xf32, #tpu.memory_space<vmem>>, vector<1x128xf32>
    %29 = vector.broadcast %28 : vector<1x128xf32> to vector<8x128xf32>
    %30 = arith.addf %27, %29 : vector<8x128xf32>
    %c0_23 = arith.constant 0 : index
    %c0_24 = arith.constant 0 : index
    %31 = vector.load %arg2[%c0_23, %c0_24] : memref<8x4xf32, #tpu.memory_space<vmem>>, vector<8x4xf32>
    %32 = arith.truncf %31 : vector<8x4xf32> to vector<8x4xbf16>
    %c0_25 = arith.constant 0 : index
    %c0_26 = arith.constant 0 : index
    %33 = vector.load %arg11[%c0_25, %c0_26] : memref<4x128xbf16, #tpu.memory_space<vmem>>, vector<4x128xbf16>
    %cst_27 = arith.constant dense<0.000000e+00> : vector<8x128xf32>
    %34 = tpu.matmul %32, %33, %cst_27 {dimension_numbers = #tpu.dot_dimension_numbers<[1], [0], [0], [1], [0, 0, 1, 1], [], []>} : vector<8x4xbf16>, vector<4x128xbf16>, vector<8x128xf32> -> vector<8x128xf32>
    %35 = arith.addf %30, %34 : vector<8x128xf32>
    %36 = arith.mulf %31, %31 : vector<8x4xf32>
    %cst_28 = arith.constant dense<0.000000e+00> : vector<8xf32>
    %37 = vector.multi_reduction <add>, %36, %cst_28 [1] : vector<8x4xf32> to vector<8xf32>
    %38 = vector.shape_cast %37 : vector<8xf32> to vector<8x1xf32>
    %cst_29 = arith.constant -5.000000e-01 : f32
    %39 = vector.broadcast %cst_29 : f32 to vector<8x1xf32>
    %40 = arith.mulf %39, %38 : vector<8x1xf32>
    %c0_30 = arith.constant 0 : index
    %c0_31 = arith.constant 0 : index
    %41 = vector.load %arg12[%c0_30, %c0_31] : memref<1x128xf32, #tpu.memory_space<vmem>>, vector<1x128xf32>
    %42 = vector.broadcast %40 : vector<8x1xf32> to vector<8x128xf32>
    %43 = vector.broadcast %41 : vector<1x128xf32> to vector<8x128xf32>
    %44 = arith.mulf %42, %43 : vector<8x128xf32>
    %45 = arith.addf %35, %44 : vector<8x128xf32>
    %c0_32 = arith.constant 0 : index
    %c0_33 = arith.constant 0 : index
    %46 = vector.load %arg13[%c0_32, %c0_33] : memref<8x128xf32, #tpu.memory_space<vmem>>, vector<8x128xf32>
    tpu.vector_store %arg13[%c0_32, %c0_33], %45 {strides = array<i32>} : memref<8x128xf32, #tpu.memory_space<vmem>>, vector<8x128xf32>,
    return
  }
  func.func @transform_0(%arg0: i32) -> (i32, i32) {
    %c0_i32 = arith.constant 0 : i32
    %c0_i32_0 = arith.constant 0 : i32
    return %arg0, %c0_i32 : i32, i32
  }
  func.func @transform_1(%arg0: i32) -> (i32, i32) {
    %c0_i32 = arith.constant 0 : i32
    %c0_i32_0 = arith.constant 0 : i32
    return %arg0, %c0_i32 : i32, i32
  }
  func.func @transform_2(%arg0: i32) -> (i32, i32) {
    %c0_i32 = arith.constant 0 : i32
    %c0_i32_0 = arith.constant 0 : i32
    %c0_i32_1 = arith.constant 0 : i32
    return %c0_i32, %c0_i32_0 : i32, i32
  }
  func.func @transform_3(%arg0: i32) -> (i32, i32) {
    %c0_i32 = arith.constant 0 : i32
    %c0_i32_0 = arith.constant 0 : i32
    %c0_i32_1 = arith.constant 0 : i32
    return %c0_i32, %c0_i32_0 : i32, i32
  }
  func.func @transform_4(%arg0: i32) -> (i32, i32) {
    %c0_i32 = arith.constant 0 : i32
    %c0_i32_0 = arith.constant 0 : i32
    %c0_i32_1 = arith.constant 0 : i32
    return %c0_i32, %c0_i32_0 : i32, i32
  }
  func.func @transform_5(%arg0: i32) -> (i32, i32) {
    %c0_i32 = arith.constant 0 : i32
    %c0_i32_0 = arith.constant 0 : i32
    %c0_i32_1 = arith.constant 0 : i32
    return %c0_i32, %c0_i32_0 : i32, i32
  }
  func.func @transform_6(%arg0: i32) -> (i32, i32) {
    %c0_i32 = arith.constant 0 : i32
    %c0_i32_0 = arith.constant 0 : i32
    %c0_i32_1 = arith.constant 0 : i32
    return %c0_i32, %c0_i32_0 : i32, i32
  }
  func.func @transform_7(%arg0: i32) -> (i32, i32) {
    %c0_i32 = arith.constant 0 : i32
    %c0_i32_0 = arith.constant 0 : i32
    %c0_i32_1 = arith.constant 0 : i32
    return %c0_i32, %c0_i32_0 : i32, i32
  }
  func.func @transform_8(%arg0: i32) -> (i32, i32) {
    %c0_i32 = arith.constant 0 : i32
    %c0_i32_0 = arith.constant 0 : i32
    %c0_i32_1 = arith.constant 0 : i32
    return %c0_i32, %c0_i32_0 : i32, i32
  }
  func.func @transform_9(%arg0: i32) -> (i32, i32) {
    %c0_i32 = arith.constant 0 : i32
    %c0_i32_0 = arith.constant 0 : i32
    %c0_i32_1 = arith.constant 0 : i32
    return %c0_i32, %c0_i32_0 : i32, i32
  }
  func.func @transform_10(%arg0: i32) -> (i32, i32) {
    %c0_i32 = arith.constant 0 : i32
    %c0_i32_0 = arith.constant 0 : i32
    %c0_i32_1 = arith.constant 0 : i32
    return %c0_i32, %c0_i32_0 : i32, i32
  }
  func.func @transform_11(%arg0: i32) -> (i32, i32) {
    %c0_i32 = arith.constant 0 : i32
    %c0_i32_0 = arith.constant 0 : i32
    %c0_i32_1 = arith.constant 0 : i32
    return %c0_i32, %c0_i32_0 : i32, i32
  }
  func.func @transform_12(%arg0: i32) -> (i32, i32) {
    %c0_i32 = arith.constant 0 : i32
    %c0_i32_0 = arith.constant 0 : i32
    return %arg0, %c0_i32 : i32, i32
  }
}

</mosaic_0001>

<llo_original>
// kernel: tpu_custom_call.1
$region0: #{tpu_custom_call.1}
  #allocation0 [shape = 'u32[]', space=smem, size = 0x4, offset = 0x4, fixed_abs, tag = 'smem constant byte address 0x4 - core index']
  #allocation1 [shape = 'u32[72,128]{1,0:T(1,128)}', space=vmem, size = 0x9000, scoped, tag = 'internal scratch']
  %s0 = inlined_call_operand.vmem [shape: f32[8,32], index: 0, kind: input, shape index: {}]
  %s1 = inlined_call_operand.vmem [shape: f32[8,4], index: 1, kind: input, shape index: {}]
  %s2 = inlined_call_operand.hbm [shape: bf16[32,128], index: 2, kind: input, shape index: {}]
  %s3 = inlined_call_operand.vmem [shape: f32[1,128], index: 3, kind: input, shape index: {}]
  %s4 = inlined_call_operand.hbm [shape: bf16[128,384], index: 4, kind: input, shape index: {}]
  %s5 = inlined_call_operand.vmem [shape: f32[1,384], index: 5, kind: input, shape index: {}]
  %s6 = inlined_call_operand.hbm [shape: bf16[384,128], index: 6, kind: input, shape index: {}]
  %s7 = inlined_call_operand.vmem [shape: f32[1,128], index: 7, kind: input, shape index: {}]
  %s8 = inlined_call_operand.hbm [shape: bf16[128,128], index: 8, kind: input, shape index: {}]
  %s9 = inlined_call_operand.vmem [shape: f32[1,128], index: 9, kind: input, shape index: {}]
  %s10 = inlined_call_operand.vmem [shape: bf16[4,128], index: 10, kind: input, shape index: {}]
  %s11 = inlined_call_operand.vmem [shape: f32[1,128], index: 11, kind: input, shape index: {}]
  %s12 = inlined_call_operand.hbm [shape: f32[8,128], index: 12, kind: output, shape index: {}]
  %s13 = sld [smem:[#allocation0]]
  $region74: #{tpu_custom_call.1} parent=0
    _
  %s15 = ssub.s32 1, %s13
  %s16 = scalar_select 0, %s15, %s13
  $region1: #{tpu_custom_call.1} parent=0
    #allocation2 [shape = 'u8[8192]{0}', space=vmem, size = 0x2000, scoped, tag = 'input window, operand 2, single buffered']
    #allocation3 [shape = 's32[1]{0}', space=sflag, size = 0x4, scoped, tag = 'scoped memory for tpu_custom_call.1']
    #allocation4 [shape = 's32[1]{0}', space=sflag, size = 0x4, scoped, tag = 'scoped memory for tpu_custom_call.1']
    #allocation5 [shape = 'u8[98304]{0}', space=vmem, size = 0x18000, scoped, tag = 'input window, operand 4, single buffered']
    #allocation6 [shape = 's32[1]{0}', space=sflag, size = 0x4, scoped, tag = 'scoped memory for tpu_custom_call.1']
    #allocation7 [shape = 'u8[98304]{0}', space=vmem, size = 0x18000, scoped, tag = 'input window, operand 6, single buffered']
    #allocation8 [shape = 'u8[32768]{0}', space=vmem, size = 0x8000, scoped, tag = 'input window, operand 8, single buffered']
    #allocation9 [shape = 's32[1]{0}', space=sflag, size = 0x4, scoped, tag = 'scoped memory for tpu_custom_call.1']
    #allocation10 [shape = 'u8[4096]{0}', space=vmem, size = 0x1000, scoped, tag = 'output window, operand 0, single buffered']
    %17 = vsyncpa [#allocation3], 0
    %18 = vsyncpa [#allocation6], 0
    %19 = vsyncpa [#allocation9], 0
    %20 = vsyncpa [#allocation4], 0
    // Predicated region
    $region2: #{tpu_custom_call.1} parent=1 // pred_check
      _
    $region3: #{tpu_custom_call.1} parent=1 // pred_check_branch
      %22 = sbr.rel (0) target = $region5
    $region4: #{tpu_custom_call.1} parent=1 // pred_region
      _
    $region5: #{tpu_custom_call.1} parent=1 // pred_fallthru
      _
    // Predicated region
    $region6: #{tpu_custom_call.1} parent=1 // pred_check
      _
    $region7: #{tpu_custom_call.1} parent=1 // pred_check_branch
      %24 = sbr.rel (0) target = $region9
    $region8: #{tpu_custom_call.1} parent=1 // pred_region
      _
    $region9: #{tpu_custom_call.1} parent=1 // pred_fallthru
      _
    // Predicated region
    $region10: #{tpu_custom_call.1} parent=1 // pred_check
      _
    $region11: #{tpu_custom_call.1} parent=1 // pred_check_branch
      %26 = sbr.rel (0) target = $region13
    $region12: #{tpu_custom_call.1} parent=1 // pred_region
      %28 = vsyncadd [#allocation3], 0
      %s29 = sshll.u32 %s2, 4
      %s30 = int_to_ptr.hbm [resolvable:$true] %s29
      %s31 = sshll.u32 [#allocation2], 4
      %s32 = int_to_ptr.vmem [resolvable:$true] %s31
      %37 = dma.hbm_to_vmem [thread:$0]  %s30, 256, %s32, [#allocation3], 64, 64, 4
    $region13: #{tpu_custom_call.1} parent=1 // pred_fallthru
      _
    // Predicated region
    $region14: #{tpu_custom_call.1} parent=1 // pred_check
      _
    $region15: #{tpu_custom_call.1} parent=1 // pred_check_branch
      %39 = sbr.rel (0) target = $region17
    $region16: #{tpu_custom_call.1} parent=1 // pred_region
      _
    $region17: #{tpu_custom_call.1} parent=1 // pred_fallthru
      _
    // Predicated region
    $region18: #{tpu_custom_call.1} parent=1 // pred_check
      _
    $region19: #{tpu_custom_call.1} parent=1 // pred_check_branch
      %41 = sbr.rel (0) target = $region21
    $region20: #{tpu_custom_call.1} parent=1 // pred_region
      %43 = vsyncadd [#allocation6], 0
      %s44 = sshll.u32 %s4, 4
      %s45 = int_to_ptr.hbm [resolvable:$true] %s44
      %s46 = sshll.u32 [#allocation5], 4
      %s47 = int_to_ptr.vmem [resolvable:$true] %s46
      %52 = dma.hbm_to_vmem [thread:$0]  %s45, 3072, %s47, [#allocation6], 192, 192, 12
    $region21: #{tpu_custom_call.1} parent=1 // pred_fallthru
      _
    // Predicated region
    $region22: #{tpu_custom_call.1} parent=1 // pred_check
      _
    $region23: #{tpu_custom_call.1} parent=1 // pred_check_branch
      %54 = sbr.rel (0) target = $region25
    $region24: #{tpu_custom_call.1} parent=1 // pred_region
      _
    $region25: #{tpu_custom_call.1} parent=1 // pred_fallthru
      _
    // Predicated region
    $region26: #{tpu_custom_call.1} parent=1 // pred_check
      _
    $region27: #{tpu_custom_call.1} parent=1 // pred_check_branch
      %56 = sbr.rel (0) target = $region29
    $region28: #{tpu_custom_call.1} parent=1 // pred_region
      %58 = vsyncadd [#allocation6], 0
      %s59 = sshll.u32 %s6, 4
      %s60 = int_to_ptr.hbm [resolvable:$true] %s59
      %s61 = sshll.u32 [#allocation7], 4
      %s62 = int_to_ptr.vmem [resolvable:$true] %s61
      %67 = dma.hbm_to_vmem [thread:$0]  %s60, 3072, %s62, [#allocation6], 64, 64, 4
    $region29: #{tpu_custom_call.1} parent=1 // pred_fallthru
      _
    // Predicated region
    $region30: #{tpu_custom_call.1} parent=1 // pred_check
      _
    $region31: #{tpu_custom_call.1} parent=1 // pred_check_branch
      %69 = sbr.rel (0) target = $region33
    $region32: #{tpu_custom_call.1} parent=1 // pred_region
      _
    $region33: #{tpu_custom_call.1} parent=1 // pred_fallthru
      _
    // Predicated region
    $region34: #{tpu_custom_call.1} parent=1 // pred_check
      _
    $region35: #{tpu_custom_call.1} parent=1 // pred_check_branch
      %71 = sbr.rel (0) target = $region37
    $region36: #{tpu_custom_call.1} parent=1 // pred_region
      %73 = vsyncadd [#allocation9], 0
      %s74 = sshll.u32 %s8, 4
      %s75 = int_to_ptr.hbm [resolvable:$true] %s74
      %s76 = sshll.u32 [#allocation8], 4
      %s77 = int_to_ptr.vmem [resolvable:$true] %s76
      %82 = dma.hbm_to_vmem [thread:$0]  %s75, 1024, %s77, [#allocation9], 64, 64, 4
    $region37: #{tpu_custom_call.1} parent=1 // pred_fallthru
      _
    // Predicated region
    $region38: #{tpu_custom_call.1} parent=1 // pred_check
      _
    $region39: #{tpu_custom_call.1} parent=1 // pred_check_branch
      %84 = sbr.rel (0) target = $region41
    $region40: #{tpu_custom_call.1} parent=1 // pred_region
      _
    $region41: #{tpu_custom_call.1} parent=1 // pred_fallthru
      _
    // Predicated region
    $region42: #{tpu_custom_call.1} parent=1 // pred_check
      _
    $region43: #{tpu_custom_call.1} parent=1 // pred_check_branch
      %86 = sbr.rel (0) target = $region45
    $region44: #{tpu_custom_call.1} parent=1 // pred_region
      _
    $region45: #{tpu_custom_call.1} parent=1 // pred_fallthru
      _
    // Predicated region
    $region46: #{tpu_custom_call.1} parent=1 // pred_check
      _
    $region47: #{tpu_custom_call.1} parent=1 // pred_check_branch
      %88 = sbr.rel (0) target = $region49
    $region48: #{tpu_custom_call.1} parent=1 // pred_region
      _
    $region49: #{tpu_custom_call.1} parent=1 // pred_fallthru
      _
    // Predicated region
    $region50: #{tpu_custom_call.1} parent=1 // pred_check
      _
    $region51: #{tpu_custom_call.1} parent=1 // pred_check_branch
      %90 = sbr.rel (0) target = $region53
    $region52: #{tpu_custom_call.1} parent=1 // pred_region
      %92 = dma.done [#allocation3], 256
    $region53: #{tpu_custom_call.1} parent=1 // pred_fallthru
      _
    // Predicated region
    $region54: #{tpu_custom_call.1} parent=1 // pred_check
      _
    $region55: #{tpu_custom_call.1} parent=1 // pred_check_branch
      %94 = sbr.rel (0) target = $region57
    $region56: #{tpu_custom_call.1} parent=1 // pred_region
      %96 = dma.done [#allocation6], 3072
    $region57: #{tpu_custom_call.1} parent=1 // pred_fallthru
      _
    // Predicated region
    $region58: #{tpu_custom_call.1} parent=1 // pred_check
      _
    $region59: #{tpu_custom_call.1} parent=1 // pred_check_branch
      %98 = sbr.rel (0) target = $region61
    $region60: #{tpu_custom_call.1} parent=1 // pred_region
      %100 = dma.done [#allocation6], 3072
    $region61: #{tpu_custom_call.1} parent=1 // pred_fallthru
      _
    // Predicated region
    $region62: #{tpu_custom_call.1} parent=1 // pred_check
      _
    $region63: #{tpu_custom_call.1} parent=1 // pred_check_branch
      %102 = sbr.rel (0) target = $region65
    $region64: #{tpu_custom_call.1} parent=1 // pred_region
      %104 = dma.done [#allocation9], 1024
    $region65: #{tpu_custom_call.1} parent=1 // pred_fallthru
      _
    %v106 = vld [vmem:[%s0] sm:$0xff]
    %v107 = vpack.c.bf16 %v106, %v106
    %v108 = vld [vmem:[#allocation2] sm:$0xf]
    %v109 = vld [vmem:[#allocation2 + $0x4] sm:$0xf]
    %v110 = vld [vmem:[#allocation2 + $0x8] sm:$0xf]
    %v111 = vld [vmem:[#allocation2 + $0xc] sm:$0xf]
    %v112 = vld [vmem:[%s3] sm:$0x1]
    %v114 = vperm.slane %v112, 0
    %v120 = vunpack.c.l.b16 %v108
    %v121 = vunpack.c.l.b16 %v109
    %v122 = vunpack.c.l.b16 %v110
    %v123 = vunpack.c.l.b16 %v111
    %v124 = vpack.c.b16 %v121, %v120
    %v125 = vpack.c.b16 %v123, %v122
    %vm128 = vcmask 261120
    %v130 = vsel %vm128, %v107, 0
    %132 = vmatpush.bf16.msra.mxu0 0
    %133 = vmatpush.bf16.msra.mxu0 0
    %134 = vmatpush.bf16.msra.mxu0 0
    %135 = vmatpush.bf16.msra.mxu0 0
    %136 = vmatpush.bf16.msra.mxu0 0
    %137 = vmatpush.bf16.msra.mxu0 0
    %138 = vmatpush.bf16.msra.mxu0 %v125
    %139 = vmatpush.bf16.msra.mxu0 %v124
    %140 = vmatmul.bf16.gmra.mxu0 %v130
    %v141 = vpop.f32.mrf.mxu0
    %v142 = vadd.f32 %v114, %v141
    %v143 = vpop.f32.mrf.mxu0
    %144 = vdwg.mxu0
    %v145 = vmax.f32 %v142, 0.0
    %v146 = vpack.c.bf16 %v145, %v145
    %v147 = vld [vmem:[#allocation5] sm:$0xff]
    %v148 = vld [vmem:[#allocation5 + $0x8] sm:$0xf]
    %v149 = vld [vmem:[#allocation5 + $0xc] sm:$0xff]
    %v150 = vld [vmem:[#allocation5 + $0x14] sm:$0xf]
    %v151 = vld [vmem:[#allocation5 + $0x18] sm:$0xff]
    %v152 = vld [vmem:[#allocation5 + $0x20] sm:$0xf]
    %v153 = vld [vmem:[#allocation5 + $0x24] sm:$0xff]
    %v154 = vld [vmem:[#allocation5 + $0x2c] sm:$0xf]
    %v155 = vld [vmem:[#allocation5 + $0x30] sm:$0xff]
    %v156 = vld [vmem:[#allocation5 + $0x38] sm:$0xf]
    %v157 = vld [vmem:[#allocation5 + $0x3c] sm:$0xff]
    %v158 = vld [vmem:[#allocation5 + $0x44] sm:$0xf]
    %v159 = vld [vmem:[#allocation5 + $0x48] sm:$0xff]
    %v160 = vld [vmem:[#allocation5 + $0x50] sm:$0xf]
    %v161 = vld [vmem:[#allocation5 + $0x54] sm:$0xff]
    %v162 = vld [vmem:[#allocation5 + $0x5c] sm:$0xf]
    %v163 = vld [vmem:[#allocation5 + $0x60] sm:$0xff]
    %v164 = vld [vmem:[#allocation5 + $0x68] sm:$0xf]
    %v165 = vld [vmem:[#allocation5 + $0x6c] sm:$0xff]
    %v166 = vld [vmem:[#allocation5 + $0x74] sm:$0xf]
    %v167 = vld [vmem:[#allocation5 + $0x78] sm:$0xff]
    %v168 = vld [vmem:[#allocation5 + $0x80] sm:$0xf]
    %v169 = vld [vmem:[#allocation5 + $0x84] sm:$0xff]
    %v170 = vld [vmem:[#allocation5 + $0x8c] sm:$0xf]
    %v171 = vld [vmem:[#allocation5 + $0x90] sm:$0xff]
    %v172 = vld [vmem:[#allocation5 + $0x98] sm:$0xf]
    %v173 = vld [vmem:[#allocation5 + $0x9c] sm:$0xff]
    %v174 = vld [vmem:[#allocation5 + $0xa4] sm:$0xf]
    %v175 = vld [vmem:[#allocation5 + $0xa8] sm:$0xff]
    %v176 = vld [vmem:[#allocation5 + $0xb0] sm:$0xf]
    %v177 = vld [vmem:[#allocation5 + $0xb4] sm:$0xff]
    %v178 = vld [vmem:[#allocation5 + $0xbc] sm:$0xf]
    %v179 = vld [vmem:[%s5] sm:$0x7]
    %v181 = vperm.slane %v179, 0
    %v182 = vperm.slane %v179, 1
    %v183 = vperm.slane %v179, 2
    %v219 = vunpack.c.l.b16 %v147
    %v220 = vunpack.c.h.b16 %v147
    %v221 = vunpack.c.l.b16 %v148
    %v222 = vunpack.c.l.b16 %v149
    %v223 = vunpack.c.h.b16 %v149
    %v224 = vunpack.c.l.b16 %v150
    %v225 = vunpack.c.l.b16 %v151
    %v226 = vunpack.c.h.b16 %v151
    %v227 = vunpack.c.l.b16 %v152
    %v228 = vunpack.c.l.b16 %v153
    %v229 = vunpack.c.h.b16 %v153
    %v230 = vunpack.c.l.b16 %v154
    %v231 = vunpack.c.l.b16 %v155
    %v232 = vunpack.c.h.b16 %v155
    %v233 = vunpack.c.l.b16 %v156
    %v234 = vunpack.c.l.b16 %v157
    %v235 = vunpack.c.h.b16 %v157
    %v236 = vunpack.c.l.b16 %v158
    %v237 = vunpack.c.l.b16 %v159
    %v238 = vunpack.c.h.b16 %v159
    %v239 = vunpack.c.l.b16 %v160
    %v240 = vunpack.c.l.b16 %v161
    %v241 = vunpack.c.h.b16 %v161
    %v242 = vunpack.c.l.b16 %v162
    %v243 = vunpack.c.l.b16 %v163
    %v244 = vunpack.c.h.b16 %v163
    %v245 = vunpack.c.l.b16 %v164
    %v246 = vunpack.c.l.b16 %v165
    %v247 = vunpack.c.h.b16 %v165
    %v248 = vunpack.c.l.b16 %v166
    %v249 = vunpack.c.l.b16 %v167
    %v250 = vunpack.c.h.b16 %v167
    %v251 = vunpack.c.l.b16 %v168
    %v252 = vunpack.c.l.b16 %v169
    %v253 = vunpack.c.h.b16 %v169
    %v254 = vunpack.c.l.b16 %v170
    %v255 = vunpack.c.l.b16 %v171
    %v256 = vunpack.c.h.b16 %v171
    %v257 = vunpack.c.l.b16 %v172
    %v258 = vunpack.c.l.b16 %v173
    %v259 = vunpack.c.h.b16 %v173
    %v260 = vunpack.c.l.b16 %v174
    %v261 = vunpack.c.l.b16 %v175
    %v262 = vunpack.c.h.b16 %v175
    %v263 = vunpack.c.l.b16 %v176
    %v264 = vunpack.c.l.b16 %v177
    %v265 = vunpack.c.h.b16 %v177
    %v266 = vunpack.c.l.b16 %v178
    %v267 = vpack.c.b16 %v222, %v219
    %v268 = vpack.c.b16 %v223, %v220
    %v269 = vpack.c.b16 %v224, %v221
    %v270 = vpack.c.b16 %v228, %v225
    %v271 = vpack.c.b16 %v229, %v226
    %v272 = vpack.c.b16 %v230, %v227
    %v273 = vpack.c.b16 %v234, %v231
    %v274 = vpack.c.b16 %v235, %v232
    %v275 = vpack.c.b16 %v236, %v233
    %v276 = vpack.c.b16 %v240, %v237
    %v277 = vpack.c.b16 %v241, %v238
    %v278 = vpack.c.b16 %v242, %v239
    %v279 = vpack.c.b16 %v246, %v243
    %v280 = vpack.c.b16 %v247, %v244
    %v281 = vpack.c.b16 %v248, %v245
    %v282 = vpack.c.b16 %v252, %v249
    %v283 = vpack.c.b16 %v253, %v250
    %v284 = vpack.c.b16 %v254, %v251
    %v285 = vpack.c.b16 %v258, %v255
    %v286 = vpack.c.b16 %v259, %v256
    %v287 = vpack.c.b16 %v260, %v257
    %v288 = vpack.c.b16 %v264, %v261
    %v289 = vpack.c.b16 %v265, %v262
    %v290 = vpack.c.b16 %v266, %v263
    %315 = vmatpush.bf16.msra.mxu0 %v288
    %316 = vmatpush.bf16.msra.mxu0 %v285
    %317 = vmatpush.bf16.msra.mxu0 %v282
    %318 = vmatpush.bf16.msra.mxu0 %v279
    %319 = vmatpush.bf16.msra.mxu0 %v276
    %320 = vmatpush.bf16.msra.mxu0 %v273
    %321 = vmatpush.bf16.msra.mxu0 %v270
    %322 = vmatpush.bf16.msra.mxu0 %v267
    %323 = vmatmul.bf16.gmra.mxu0 %v146
    %v324 = vpop.f32.mrf.mxu0
    %v325 = vadd.f32 %v181, %v324
    %v326 = vpop.f32.mrf.mxu0
    %327 = vdwg.mxu0
    %328 = vmatpush.bf16.msra.mxu0 %v289
    %329 = vmatpush.bf16.msra.mxu0 %v286
    %330 = vmatpush.bf16.msra.mxu0 %v283
    %331 = vmatpush.bf16.msra.mxu0 %v280
    %332 = vmatpush.bf16.msra.mxu0 %v277
    %333 = vmatpush.bf16.msra.mxu0 %v274
    %334 = vmatpush.bf16.msra.mxu0 %v271
    %335 = vmatpush.bf16.msra.mxu0 %v268
    %336 = vmatmul.bf16.gmra.mxu0 %v146
    %v337 = vpop.f32.mrf.mxu0
    %v338 = vadd.f32 %v182, %v337
    %v339 = vpop.f32.mrf.mxu0
    %340 = vdwg.mxu0
    %341 = vmatpush.bf16.msra.mxu0 %v290
    %342 = vmatpush.bf16.msra.mxu0 %v287
    %343 = vmatpush.bf16.msra.mxu0 %v284
    %344 = vmatpush.bf16.msra.mxu0 %v281
    %345 = vmatpush.bf16.msra.mxu0 %v278
    %346 = vmatpush.bf16.msra.mxu0 %v275
    %347 = vmatpush.bf16.msra.mxu0 %v272
    %348 = vmatpush.bf16.msra.mxu0 %v269
    %349 = vmatmul.bf16.gmra.mxu0 %v146
    %v350 = vpop.f32.mrf.mxu0
    %v351 = vadd.f32 %v183, %v350
    %v352 = vpop.f32.mrf.mxu0
    %353 = vdwg.mxu0
    %v354 = vmax.f32 %v325, 0.0
    %v355 = vmax.f32 %v338, 0.0
    %v356 = vmax.f32 %v351, 0.0
    %v357 = vpack.c.bf16 %v354, %v354
    %v358 = vpack.c.bf16 %v355, %v355
    %v359 = vpack.c.bf16 %v356, %v356
    %v360 = vld [vmem:[#allocation7] sm:$0xf]
    %v361 = vld [vmem:[#allocation7 + $0x4] sm:$0xf]
    %v362 = vld [vmem:[#allocation7 + $0x8] sm:$0xf]
    %v363 = vld [vmem:[#allocation7 + $0xc] sm:$0xf]
    %v364 = vld [vmem:[#allocation7 + $0x10] sm:$0xf]
    %v365 = vld [vmem:[#allocation7 + $0x14] sm:$0xf]
    %v366 = vld [vmem:[#allocation7 + $0x18] sm:$0xf]
    %v367 = vld [vmem:[#allocation7 + $0x1c] sm:$0xf]
    %v368 = vld [vmem:[#allocation7 + $0x20] sm:$0xf]
    %v369 = vld [vmem:[#allocation7 + $0x24] sm:$0xf]
    %v370 = vld [vmem:[#allocation7 + $0x28] sm:$0xf]
    %v371 = vld [vmem:[#allocation7 + $0x2c] sm:$0xf]
    %v372 = vld [vmem:[#allocation7 + $0x30] sm:$0xf]
    %v373 = vld [vmem:[#allocation7 + $0x34] sm:$0xf]
    %v374 = vld [vmem:[#allocation7 + $0x38] sm:$0xf]
    %v375 = vld [vmem:[#allocation7 + $0x3c] sm:$0xf]
    %v376 = vld [vmem:[#allocation7 + $0x40] sm:$0xf]
    %v377 = vld [vmem:[#allocation7 + $0x44] sm:$0xf]
    %v378 = vld [vmem:[#allocation7 + $0x48] sm:$0xf]
    %v379 = vld [vmem:[#allocation7 + $0x4c] sm:$0xf]
    %v380 = vld [vmem:[#allocation7 + $0x50] sm:$0xf]
    %v381 = vld [vmem:[#allocation7 + $0x54] sm:$0xf]
    %v382 = vld [vmem:[#allocation7 + $0x58] sm:$0xf]
    %v383 = vld [vmem:[#allocation7 + $0x5c] sm:$0xf]
    %v384 = vld [vmem:[#allocation7 + $0x60] sm:$0xf]
    %v385 = vld [vmem:[#allocation7 + $0x64] sm:$0xf]
    %v386 = vld [vmem:[#allocation7 + $0x68] sm:$0xf]
    %v387 = vld [vmem:[#allocation7 + $0x6c] sm:$0xf]
    %v388 = vld [vmem:[#allocation7 + $0x70] sm:$0xf]
    %v389 = vld [vmem:[#allocation7 + $0x74] sm:$0xf]
    %v390 = vld [vmem:[#allocation7 + $0x78] sm:$0xf]
    %v391 = vld [vmem:[#allocation7 + $0x7c] sm:$0xf]
    %v392 = vld [vmem:[#allocation7 + $0x80] sm:$0xf]
    %v393 = vld [vmem:[#allocation7 + $0x84] sm:$0xf]
    %v394 = vld [vmem:[#allocation7 + $0x88] sm:$0xf]
    %v395 = vld [vmem:[#allocation7 + $0x8c] sm:$0xf]
    %v396 = vld [vmem:[#allocation7 + $0x90] sm:$0xf]
    %v397 = vld [vmem:[#allocation7 + $0x94] sm:$0xf]
    %v398 = vld [vmem:[#allocation7 + $0x98] sm:$0xf]
    %v399 = vld [vmem:[#allocation7 + $0x9c] sm:$0xf]
    %v400 = vld [vmem:[#allocation7 + $0xa0] sm:$0xf]
    %v401 = vld [vmem:[#allocation7 + $0xa4] sm:$0xf]
    %v402 = vld [vmem:[#allocation7 + $0xa8] sm:$0xf]
    %v403 = vld [vmem:[#allocation7 + $0xac] sm:$0xf]
    %v404 = vld [vmem:[#allocation7 + $0xb0] sm:$0xf]
    %v405 = vld [vmem:[#allocation7 + $0xb4] sm:$0xf]
    %v406 = vld [vmem:[#allocation7 + $0xb8] sm:$0xf]
    %v407 = vld [vmem:[#allocation7 + $0xbc] sm:$0xf]
    %v408 = vld [vmem:[%s7] sm:$0x1]
    %v410 = vperm.slane %v408, 0
    %v460 = vunpack.c.l.b16 %v360
    %v461 = vunpack.c.l.b16 %v361
    %v462 = vunpack.c.l.b16 %v362
    %v463 = vunpack.c.l.b16 %v363
    %v464 = vunpack.c.l.b16 %v364
    %v465 = vunpack.c.l.b16 %v365
    %v466 = vunpack.c.l.b16 %v366
    %v467 = vunpack.c.l.b16 %v367
    %v468 = vunpack.c.l.b16 %v368
    %v469 = vunpack.c.l.b16 %v369
    %v470 = vunpack.c.l.b16 %v370
    %v471 = vunpack.c.l.b16 %v371
    %v472 = vunpack.c.l.b16 %v372
    %v473 = vunpack.c.l.b16 %v373
    %v474 = vunpack.c.l.b16 %v374
    %v475 = vunpack.c.l.b16 %v375
    %v476 = vunpack.c.l.b16 %v376
    %v477 = vunpack.c.l.b16 %v377
    %v478 = vunpack.c.l.b16 %v378
    %v479 = vunpack.c.l.b16 %v379
    %v480 = vunpack.c.l.b16 %v380
    %v481 = vunpack.c.l.b16 %v381
    %v482 = vunpack.c.l.b16 %v382
    %v483 = vunpack.c.l.b16 %v383
    %v484 = vunpack.c.l.b16 %v384
    %v485 = vunpack.c.l.b16 %v385
    %v486 = vunpack.c.l.b16 %v386
    %v487 = vunpack.c.l.b16 %v387
    %v488 = vunpack.c.l.b16 %v388
    %v489 = vunpack.c.l.b16 %v389
    %v490 = vunpack.c.l.b16 %v390
    %v491 = vunpack.c.l.b16 %v391
    %v492 = vunpack.c.l.b16 %v392
    %v493 = vunpack.c.l.b16 %v393
    %v494 = vunpack.c.l.b16 %v394
    %v495 = vunpack.c.l.b16 %v395
    %v496 = vunpack.c.l.b16 %v396
    %v497 = vunpack.c.l.b16 %v397
    %v498 = vunpack.c.l.b16 %v398
    %v499 = vunpack.c.l.b16 %v399
    %v500 = vunpack.c.l.b16 %v400
    %v501 = vunpack.c.l.b16 %v401
    %v502 = vunpack.c.l.b16 %v402
    %v503 = vunpack.c.l.b16 %v403
    %v504 = vunpack.c.l.b16 %v404
    %v505 = vunpack.c.l.b16 %v405
    %v506 = vunpack.c.l.b16 %v406
    %v507 = vunpack.c.l.b16 %v407
    %v508 = vpack.c.b16 %v461, %v460
    %v509 = vpack.c.b16 %v463, %v462
    %v510 = vpack.c.b16 %v465, %v464
    %v511 = vpack.c.b16 %v467, %v466
    %v512 = vpack.c.b16 %v469, %v468
    %v513 = vpack.c.b16 %v471, %v470
    %v514 = vpack.c.b16 %v473, %v472
    %v515 = vpack.c.b16 %v475, %v474
    %v516 = vpack.c.b16 %v477, %v476
    %v517 = vpack.c.b16 %v479, %v478
    %v518 = vpack.c.b16 %v481, %v480
    %v519 = vpack.c.b16 %v483, %v482
    %v520 = vpack.c.b16 %v485, %v484
    %v521 = vpack.c.b16 %v487, %v486
    %v522 = vpack.c.b16 %v489, %v488
    %v523 = vpack.c.b16 %v491, %v490
    %v524 = vpack.c.b16 %v493, %v492
    %v525 = vpack.c.b16 %v495, %v494
    %v526 = vpack.c.b16 %v497, %v496
    %v527 = vpack.c.b16 %v499, %v498
    %v528 = vpack.c.b16 %v501, %v500
    %v529 = vpack.c.b16 %v503, %v502
    %v530 = vpack.c.b16 %v505, %v504
    %v531 = vpack.c.b16 %v507, %v506
    %556 = vmatpush.bf16.msra.mxu0 %v515
    %557 = vmatpush.bf16.msra.mxu0 %v514
    %558 = vmatpush.bf16.msra.mxu0 %v513
    %559 = vmatpush.bf16.msra.mxu0 %v512
    %560 = vmatpush.bf16.msra.mxu0 %v511
    %561 = vmatpush.bf16.msra.mxu0 %v510
    %562 = vmatpush.bf16.msra.mxu0 %v509
    %563 = vmatpush.bf16.msra.mxu0 %v508
    %564 = vmatmul.bf16.gmra.mxu0 %v357
    %v565 = vpop.f32.mrf.mxu0
    %v566 = vadd.f32 %v410, %v565
    %v567 = vpop.f32.mrf.mxu0
    %568 = vdwg.mxu0
    %569 = vmatpush.bf16.msra.mxu0 %v523
    %570 = vmatpush.bf16.msra.mxu0 %v522
    %571 = vmatpush.bf16.msra.mxu0 %v521
    %572 = vmatpush.bf16.msra.mxu0 %v520
    %573 = vmatpush.bf16.msra.mxu0 %v519
    %574 = vmatpush.bf16.msra.mxu0 %v518
    %575 = vmatpush.bf16.msra.mxu0 %v517
    %576 = vmatpush.bf16.msra.mxu0 %v516
    %577 = vmatmul.bf16.gmra.mxu0 %v358
    %v578 = vpop.f32.mrf.mxu0
    %v579 = vadd.f32 %v566, %v578
    %v580 = vpop.f32.mrf.mxu0
    %581 = vdwg.mxu0
    %582 = vmatpush.bf16.msra.mxu0 %v531
    %583 = vmatpush.bf16.msra.mxu0 %v530
    %584 = vmatpush.bf16.msra.mxu0 %v529
    %585 = vmatpush.bf16.msra.mxu0 %v528
    %586 = vmatpush.bf16.msra.mxu0 %v527
    %587 = vmatpush.bf16.msra.mxu0 %v526
    %588 = vmatpush.bf16.msra.mxu0 %v525
    %589 = vmatpush.bf16.msra.mxu0 %v524
    %590 = vmatmul.bf16.gmra.mxu0 %v359
    %v591 = vpop.f32.mrf.mxu0
    %v592 = vadd.f32 %v579, %v591
    %v593 = vpop.f32.mrf.mxu0
    %594 = vdwg.mxu0
    %v595 = vmax.f32 %v592, 0.0
    %v596 = vpack.c.bf16 %v595, %v595
    %v597 = vld [vmem:[#allocation8] sm:$0xf]
    %v598 = vld [vmem:[#allocation8 + $0x4] sm:$0xf]
    %v599 = vld [vmem:[#allocation8 + $0x8] sm:$0xf]
    %v600 = vld [vmem:[#allocation8 + $0xc] sm:$0xf]
    %v601 = vld [vmem:[#allocation8 + $0x10] sm:$0xf]
    %v602 = vld [vmem:[#allocation8 + $0x14] sm:$0xf]
    %v603 = vld [vmem:[#allocation8 + $0x18] sm:$0xf]
    %v604 = vld [vmem:[#allocation8 + $0x1c] sm:$0xf]
    %v605 = vld [vmem:[#allocation8 + $0x20] sm:$0xf]
    %v606 = vld [vmem:[#allocation8 + $0x24] sm:$0xf]
    %v607 = vld [vmem:[#allocation8 + $0x28] sm:$0xf]
    %v608 = vld [vmem:[#allocation8 + $0x2c] sm:$0xf]
    %v609 = vld [vmem:[#allocation8 + $0x30] sm:$0xf]
    %v610 = vld [vmem:[#allocation8 + $0x34] sm:$0xf]
    %v611 = vld [vmem:[#allocation8 + $0x38] sm:$0xf]
    %v612 = vld [vmem:[#allocation8 + $0x3c] sm:$0xf]
    %v613 = vld [vmem:[%s9] sm:$0x1]
    %v615 = vperm.slane %v613, 0
    %v633 = vunpack.c.l.b16 %v597
    %v634 = vunpack.c.l.b16 %v598
    %v635 = vunpack.c.l.b16 %v599
    %v636 = vunpack.c.l.b16 %v600
    %v637 = vunpack.c.l.b16 %v601
    %v638 = vunpack.c.l.b16 %v602
    %v639 = vunpack.c.l.b16 %v603
    %v640 = vunpack.c.l.b16 %v604
    %v641 = vunpack.c.l.b16 %v605
    %v642 = vunpack.c.l.b16 %v606
    %v643 = vunpack.c.l.b16 %v607
    %v644 = vunpack.c.l.b16 %v608
    %v645 = vunpack.c.l.b16 %v609
    %v646 = vunpack.c.l.b16 %v610
    %v647 = vunpack.c.l.b16 %v611
    %v648 = vunpack.c.l.b16 %v612
    %v649 = vpack.c.b16 %v634, %v633
    %v650 = vpack.c.b16 %v636, %v635
    %v651 = vpack.c.b16 %v638, %v637
    %v652 = vpack.c.b16 %v640, %v639
    %v653 = vpack.c.b16 %v642, %v641
    %v654 = vpack.c.b16 %v644, %v643
    %v655 = vpack.c.b16 %v646, %v645
    %v656 = vpack.c.b16 %v648, %v647
    %665 = vmatpush.bf16.msra.mxu0 %v656
    %666 = vmatpush.bf16.msra.mxu0 %v655
    %667 = vmatpush.bf16.msra.mxu0 %v654
    %668 = vmatpush.bf16.msra.mxu0 %v653
    %669 = vmatpush.bf16.msra.mxu0 %v652
    %670 = vmatpush.bf16.msra.mxu0 %v651
    %671 = vmatpush.bf16.msra.mxu0 %v650
    %672 = vmatpush.bf16.msra.mxu0 %v649
    %673 = vmatmul.bf16.gmra.mxu0 %v596
    %v674 = vpop.f32.mrf.mxu0
    %v675 = vadd.f32 %v615, %v674
    %v676 = vpop.f32.mrf.mxu0
    %677 = vdwg.mxu0
    %v678 = vld [vmem:[%s1] sm:$0xff]
    %v679 = vpack.c.bf16 %v678, %v678
    %v680 = vld [vmem:[%s10] sm:$0x3]
    %vm681 = vcmask 31744
    %v683 = vsel %vm681, %v679, 0
    %vm685 = vcmask 1041408
    %v687 = vsel %vm685, %v680, 0
    %689 = vmatpush.bf16.msra.mxu0 0
    %690 = vmatpush.bf16.msra.mxu0 0
    %691 = vmatpush.bf16.msra.mxu0 0
    %692 = vmatpush.bf16.msra.mxu0 0
    %693 = vmatpush.bf16.msra.mxu0 0
    %694 = vmatpush.bf16.msra.mxu0 0
    %695 = vmatpush.bf16.msra.mxu0 0
    %696 = vmatpush.bf16.msra.mxu0 %v687
    %697 = vmatmul.bf16.gmra.mxu0 %v683
    %v698 = vpop.f32.mrf.mxu0
    %v699 = vadd.f32 0.0, %v698
    %v700 = vpop.f32.mrf.mxu0
    %701 = vdwg.mxu0
    %v702 = vadd.f32 %v675, %v699
    %v703 = vmul.f32 %v678, %v678
    %v704 = vsel %vm681, %v703, 0.0
    %705 = vadd.xlane.f32.xlu0 %v704
    %v706 = vpop.xlane.xlu0 %705
    %v707 = vmul.f32 %v706, -0.5
    %v708 = vld [vmem:[%s11] sm:$0x1]
    %v710 = vperm.slane %v708, 0
    %v712 = vmul.f32 %v707, %v710
    %v713 = vadd.f32 %v702, %v712
    %714 = vst [vmem:[#allocation10] sm:$0xff] %v713
    // Predicated region
    $region66: #{tpu_custom_call.1} parent=1 // pred_check
      _
    $region67: #{tpu_custom_call.1} parent=1 // pred_check_branch
      %716 = sbr.rel (0) target = $region69
    $region68: #{tpu_custom_call.1} parent=1 // pred_region
      %718 = vsyncadd [#allocation4], 0
      %s720 = sshll.u32 [#allocation10], 4
      %s721 = int_to_ptr.vmem [resolvable:$true] %s720
      %s722 = sshll.u32 %s12, 4
      %s723 = int_to_ptr.hbm [resolvable:$true] %s722
      %725 = dma.vmem_to_hbm [thread:$0]  %s721, 128, %s723, [#allocation4]
    $region69: #{tpu_custom_call.1} parent=1 // pred_fallthru
      _
    // Predicated region
    $region70: #{tpu_custom_call.1} parent=1 // pred_check
      _
    $region71: #{tpu_custom_call.1} parent=1 // pred_check_branch
      %727 = sbr.rel (0) target = $region73
    $region72: #{tpu_custom_call.1} parent=1 // pred_region
      %729 = dma.done [#allocation4], 128
    $region73: #{tpu_custom_call.1} parent=1 // pred_fallthru
      _
    %730 = vsyncpa [#allocation3], 1
    %731 = vsyncpa [#allocation6], 1
    %732 = vsyncpa [#allocation9], 1
    %733 = vsyncpa [#allocation4], 1

</llo_original>
